<compile_context>
chip_gen: v7x
topology: tpu7x:2x2x1
jax: 0.10.0
libtpu: 0.0.40
codegen_flags: <defaults>
</compile_context>

<pallas_src>
import functools

import jax
import jax.numpy as jnp
from jax.experimental import pallas as pl
from jax.experimental.pallas import tpu as pltpu

MARGIN = 1.0
_PAIRWISE_EPS = 1e-6  # matches F.pairwise_distance default eps


def _cdiv(a: int, b: int) -> int:
    return -(-a // b)


def _round_up(x: int, m: int) -> int:
    return _cdiv(x, m) * m


def _tpu_hw_info():
    """(tensorcores_per_chip, per-core VMEM bytes), conservative fallbacks."""
    vmem_cap = 64 << 20       # v7x per-TC value: a safe lower bound everywhere
    num_tc = 1
    try:
        vmem_cap = int(pltpu.get_tpu_info().vmem_capacity_bytes)
    except Exception:
        pass
    try:
        if "v7" in jax.devices()[0].device_kind.lower():
            num_tc = 2        # v7x has 2 TensorCores per chip; v5e/v6e have 1
    except Exception:
        pass
    if num_tc > 1 and vmem_cap > (80 << 20):
        vmem_cap //= num_tc   # capacity was reported per-chip; budget per-TC
    return num_tc, vmem_cap


def _contrastive_loss_kernel(emb1_ref, emb2_ref, label_ref, out_ref, acc_ref,
                             *, batch, tile_rows, tiles_per_split, needs_mask):
    s = pl.program_id(0)            # split axis ("parallel", 2nd TC on v7x)
    t = pl.program_id(1)            # batch-tile axis ("arbitrary", reduction)
    n_t = pl.num_programs(1)

    @pl.when(t == 0)
    def _():
        acc_ref[...] = jnp.zeros_like(acc_ref)

    # Widen on the tile (VPU cast); HBM traffic stays at native dtype.
    x1 = emb1_ref[...].astype(jnp.float32)
    x2 = emb2_ref[...].astype(jnp.float32)
    lab = label_ref[...].astype(jnp.float32)

    diff = x1 - x2 + _PAIRWISE_EPS
    # Row sum-of-squares on the MXU (frees XLU/VALU slots). Narrow ones RHS
    # keeps the result (TB, 1); HIGHEST precision => exact f32 accumulation.
    ones = jnp.ones((diff.shape[-1], 1), jnp.float32)
    sq = jnp.dot(diff * diff, ones,
                 precision=jax.lax.Precision.HIGHEST,
                 preferred_element_type=jnp.float32)           # (TB, 1)
    dist = jnp.sqrt(sq)                                        # EUP sqrt
    hinge = jnp.maximum(MARGIN - dist, 0.0)
    # (1 - lab) * sq + lab * hinge^2  ==  sq + lab * (hinge^2 - sq)
    per_example = sq + lab * (hinge * hinge - sq)

    if needs_mask:
        row0 = (s * tiles_per_split + t) * tile_rows

        @pl.when(row0 + tile_rows > batch)      # tail / clamped-overflow tiles
        def _():
            rows = row0 + jax.lax.broadcasted_iota(
                jnp.int32, per_example.shape, 0)
            acc_ref[...] += jnp.where(rows < batch, per_example, 0.0)

        @pl.when(row0 + tile_rows <= batch)     # interior tiles: no mask work
        def _():
            acc_ref[...] += per_example
    else:
        acc_ref[...] += per_example

    @pl.when(t == n_t - 1)
    def _():
        total = jnp.sum(acc_ref[...], axis=0, keepdims=True)   # (1, 1)
        # One lane-dense (8,128) block per split holding its partial sum.
        out_ref[...] = jnp.broadcast_to(total, out_ref.shape).astype(jnp.float32)


def contrastive_loss(emb1: jax.Array, emb2: jax.Array, label: jax.Array,
                     *, tile_rows: int | None = None,
                     num_splits: int | None = None) -> jax.Array:
    """emb1, emb2: (B, D); label: (B,). Returns scalar float32 loss."""
    B, D = emb1.shape
    assert emb2.shape == (B, D)
    if label.dtype == jnp.bool_:
        label = label.astype(jnp.int32)
    label2d = label.reshape(B, 1)            # native dtype; widened in-kernel

    emb_itemsize = jnp.dtype(emb1.dtype).itemsize
    lbl_itemsize = jnp.dtype(label2d.dtype).itemsize
    # sublane packing: f32 -> 8 rows, bf16 -> 16, int8/fp8 -> 32
    row_align = 8 * max(1, 4 // emb_itemsize)
    d_pad = _round_up(D, 128)

    num_tc, vmem_cap = _tpu_hw_info()

    # Resident-VMEM budget per TensorCore (~60% of capacity, capped).
    total_budget = max(24 << 20, min(int(vmem_cap * 0.6), 80 << 20))
    # Lane-padded bytes each tile row pins in VMEM:
    #   2 emb inputs x 2 pipeline buffers  +  label double-buffer (128 lanes)
    #   +  f32 (tb,1) accumulator (128 lanes)
    bytes_per_row = (4 * d_pad * emb_itemsize
                     + 2 * 128 * lbl_itemsize
                     + 128 * 4)

    if tile_rows is None:
        tb = total_budget // bytes_per_row
    else:
        tb = tile_rows
    tb = max(row_align, (tb // row_align) * row_align)
    tb = min(tb, _round_up(B, row_align))

    n_tiles = _cdiv(B, tb)
    if num_splits is None:
        # Only shard the reduction across splits where a 2nd TensorCore exists.
        n_splits = num_tc if (num_tc > 1 and n_tiles >= 2) else 1
    else:
        n_splits = max(1, min(num_splits, n_tiles))
    tiles_per_split = _cdiv(n_tiles, n_splits)

    # Static fast path: no tile can overlap the tail and no overflow tiles.
    needs_mask = (B % tb != 0) or (n_tiles % n_splits != 0)

    def data_index_map(s, t):
        # Clamp so overflow tiles of the last split never DMA out of bounds;
        # the in-kernel row mask zeroes their contribution.
        return (jnp.minimum(s * tiles_per_split + t, n_tiles - 1), 0)

    kernel = functools.partial(
        _contrastive_loss_kernel,
        batch=B, tile_rows=tb, tiles_per_split=tiles_per_split,
        needs_mask=needs_mask)

    resident_bytes = tb * bytes_per_row + 8 * 128 * 4
    vmem_limit = min(max(int(resident_bytes * 1.25) + (4 << 20), 32 << 20),
                     vmem_cap)

    cost = pl.CostEstimate(
        flops=int(B * (5 * D + 12)),
        transcendentals=int(B),
        bytes_accessed=int(emb1.nbytes + emb2.nbytes + label2d.nbytes
                           + n_splits * 8 * 128 * 4),
    )

    out = pl.pallas_call(
        kernel,
        out_shape=jax.ShapeDtypeStruct((n_splits * 8, 128), jnp.float32),
        grid_spec=pltpu.PrefetchScalarGridSpec(
            num_scalar_prefetch=0,
            grid=(n_splits, tiles_per_split),
            in_specs=[
                pl.BlockSpec((tb, D), data_index_map),
                pl.BlockSpec((tb, D), data_index_map),
                pl.BlockSpec((tb, 1), data_index_map),
            ],
            out_specs=pl.BlockSpec((8, 128), lambda s, t: (s, 0)),
            scratch_shapes=[pltpu.VMEM((tb, 1), jnp.float32)],
        ),
        compiler_params=pltpu.CompilerParams(
            dimension_semantics=("parallel", "arbitrary"),
            vmem_limit_bytes=vmem_limit,
        ),
        cost_estimate=cost,
    )(emb1, emb2, label2d)

    partial_sums = out[0::8, 0]                 # one partial sum per split
    return jnp.sum(partial_sums) / jnp.float32(B)


def _reference(emb1, emb2, label, margin=MARGIN):
    diff = emb1.astype(jnp.float32) - emb2.astype(jnp.float32) + _PAIRWISE_EPS
    dist = jnp.sqrt(jnp.sum(diff * diff, axis=-1))
    hinge = jnp.maximum(margin - dist, 0.0)
    return jnp.mean((1.0 - label) * dist**2 + label * hinge**2)


if __name__ == "__main__":
    key = jax.random.PRNGKey(0)
    k1, k2, k3 = jax.random.split(key, 3)

    # Primary small-shape check (single tile, static no-mask path).
    B, D = 8, 32
    emb1 = jax.random.normal(k1, (B, D), dtype=jnp.float32)
    emb2 = jax.random.normal(k2, (B, D), dtype=jnp.float32)
    label = jax.random.bernoulli(k3, 0.5, (B,)).astype(jnp.float32)

    loss = contrastive_loss(emb1, emb2, label)
    jax.block_until_ready(loss)
    ref = _reference(emb1, emb2, label)
    assert jnp.allclose(loss, ref, rtol=1e-4, atol=1e-5), (loss, ref)

    # Secondary check exercising the tiled / 2-split / clamped-overflow /
    # tail-masked path (forced, so it runs regardless of chip generation).
    B2, D2 = 20, 32
    k4, k5, k6 = jax.random.split(jax.random.PRNGKey(1), 3)
    e1 = jax.random.normal(k4, (B2, D2), dtype=jnp.float32)
    e2 = jax.random.normal(k5, (B2, D2), dtype=jnp.float32)
    lb = jax.random.bernoulli(k6, 0.5, (B2,)).astype(jnp.float32)
    loss2 = contrastive_loss(e1, e2, lb, tile_rows=8, num_splits=2)
    jax.block_until_ready(loss2)
    ref2 = _reference(e1, e2, lb)
    assert jnp.allclose(loss2, ref2, rtol=1e-4, atol=1e-5), (loss2, ref2)

    print("KERNEL_OK")
</pallas_src>

<mosaic_0001>
module attributes {stable_mosaic.version = 11 : i64} {
  func.func @_contrastive_loss_kernel(%arg0: i32, %arg1: i32, %arg2: memref<8x32xf32, #tpu.memory_space<vmem>>, %arg3: memref<8x32xf32, #tpu.memory_space<vmem>>, %arg4: memref<8x1xf32, #tpu.memory_space<vmem>>, %arg5: memref<8x128xf32, #tpu.memory_space<vmem>>, %arg6: memref<8x1xf32, #tpu.memory_space<vmem>>) attributes {dimension_semantics = [#tpu.dimension_semantics<parallel>, #tpu.dimension_semantics<arbitrary>], iteration_bounds = array<i64: 1, 1>, scalar_prefetch = 0 : i64, scratch_operands = 1 : i64, tpu.core_type = #tpu.core_type<tc>, window_params = [{transform_indices = @transform_0, window_bounds = array<i64: 8, 32>}, {transform_indices = @transform_1, window_bounds = array<i64: 8, 32>}, {transform_indices = @transform_2, window_bounds = array<i64: 8, 1>}, {transform_indices = @transform_3, window_bounds = array<i64: 8, 128>}]} {
    %c0_i32 = arith.constant 0 : i32
    %0 = arith.cmpi eq, %arg1, %c0_i32 : i32
    %1 = arith.extui %0 : i1 to i32
    %c0_i32_0 = arith.constant 0 : i32
    %2 = arith.cmpi ne, %1, %c0_i32_0 : i32
    scf.if %2 {
      %cst_16 = arith.constant 0.000000e+00 : f32
      %27 = vector.broadcast %cst_16 : f32 to vector<8x1xf32>
      %c0_17 = arith.constant 0 : index
      %c0_18 = arith.constant 0 : index
      %28 = vector.load %arg6[%c0_17, %c0_18] : memref<8x1xf32, #tpu.memory_space<vmem>>, vector<8x1xf32>
      tpu.vector_store %arg6[%c0_17, %c0_18], %27 {strides = array<i32>} : memref<8x1xf32, #tpu.memory_space<vmem>>, vector<8x1xf32>,
    } else {
    }
    %c0 = arith.constant 0 : index
    %c0_1 = arith.constant 0 : index
    %3 = vector.load %arg2[%c0, %c0_1] : memref<8x32xf32, #tpu.memory_space<vmem>>, vector<8x32xf32>
    %c0_2 = arith.constant 0 : index
    %c0_3 = arith.constant 0 : index
    %4 = vector.load %arg3[%c0_2, %c0_3] : memref<8x32xf32, #tpu.memory_space<vmem>>, vector<8x32xf32>
    %c0_4 = arith.constant 0 : index
    %c0_5 = arith.constant 0 : index
    %5 = vector.load %arg4[%c0_4, %c0_5] : memref<8x1xf32, #tpu.memory_space<vmem>>, vector<8x1xf32>
    %6 = arith.subf %3, %4 : vector<8x32xf32>
    %cst = arith.constant 9.99999997E-7 : f32
    %7 = vector.broadcast %cst : f32 to vector<8x32xf32>
    %8 = arith.addf %6, %7 : vector<8x32xf32>
    %cst_6 = arith.constant 1.000000e+00 : f32
    %9 = vector.broadcast %cst_6 : f32 to vector<32x1xf32>
    %10 = arith.mulf %8, %8 : vector<8x32xf32>
    %cst_7 = arith.constant dense<0.000000e+00> : vector<8x1xf32>
    %11 = tpu.matmul %10, %9, %cst_7 {dimension_numbers = #tpu.dot_dimension_numbers<[1], [0], [0], [1], [0, 0, 1, 1], [], []>, precision = #tpu.contract_precision<fp32>} : vector<8x32xf32>, vector<32x1xf32>, vector<8x1xf32> -> vector<8x1xf32>
    %12 = math.sqrt %11 : vector<8x1xf32>
    %cst_8 = arith.constant 1.000000e+00 : f32
    %13 = vector.broadcast %cst_8 : f32 to vector<8x1xf32>
    %14 = arith.subf %13, %12 : vector<8x1xf32>
    %cst_9 = arith.constant 0.000000e+00 : f32
    %15 = vector.broadcast %cst_9 : f32 to vector<8x1xf32>
    %16 = arith.maximumf %14, %15 : vector<8x1xf32>
    %17 = arith.mulf %16, %16 : vector<8x1xf32>
    %18 = arith.subf %17, %11 : vector<8x1xf32>
    %19 = arith.mulf %5, %18 : vector<8x1xf32>
    %20 = arith.addf %11, %19 : vector<8x1xf32>
    %c0_10 = arith.constant 0 : index
    %c0_11 = arith.constant 0 : index
    %21 = vector.load %arg6[%c0_10, %c0_11] : memref<8x1xf32, #tpu.memory_space<vmem>>, vector<8x1xf32>
    %22 = arith.addf %21, %20 : vector<8x1xf32>
    %c0_12 = arith.constant 0 : index
    %c0_13 = arith.constant 0 : index
    %23 = vector.load %arg6[%c0_12, %c0_13] : memref<8x1xf32, #tpu.memory_space<vmem>>, vector<8x1xf32>
    tpu.vector_store %arg6[%c0_12, %c0_13], %22 {strides = array<i32>} : memref<8x1xf32, #tpu.memory_space<vmem>>, vector<8x1xf32>,
    %c0_i32_14 = arith.constant 0 : i32
    %24 = arith.cmpi eq, %arg1, %c0_i32_14 : i32
    %25 = arith.extui %24 : i1 to i32
    %c0_i32_15 = arith.constant 0 : i32
    %26 = arith.cmpi ne, %25, %c0_i32_15 : i32
    scf.if %26 {
      %c0_16 = arith.constant 0 : index
      %c0_17 = arith.constant 0 : index
      %27 = vector.load %arg6[%c0_16, %c0_17] : memref<8x1xf32, #tpu.memory_space<vmem>>, vector<8x1xf32>
      %cst_18 = arith.constant dense<0.000000e+00> : vector<1xf32>
      %28 = vector.multi_reduction <add>, %27, %cst_18 [0] : vector<8x1xf32> to vector<1xf32>
      %29 = vector.shape_cast %28 : vector<1xf32> to vector<1x1xf32>
      %30 = vector.shape_cast %29 : vector<1x1xf32> to vector<1x1xf32>
      %31 = vector.broadcast %30 : vector<1x1xf32> to vector<8x128xf32>
      %c0_19 = arith.constant 0 : index
      %c0_20 = arith.constant 0 : index
      %32 = vector.load %arg5[%c0_19, %c0_20] : memref<8x128xf32, #tpu.memory_space<vmem>>, vector<8x128xf32>
      tpu.vector_store %arg5[%c0_19, %c0_20], %31 {strides = array<i32>} : memref<8x128xf32, #tpu.memory_space<vmem>>, vector<8x128xf32>,
    } else {
    }
    return
  }
  func.func @transform_0(%arg0: i32, %arg1: i32) -> (i32, i32) {
    %c1_i32 = arith.constant 1 : i32
    %0 = arith.muli %arg0, %c1_i32 : i32
    %1 = arith.addi %0, %arg1 : i32
    %c0_i32 = arith.constant 0 : i32
    %2 = arith.minsi %1, %c0_i32 : i32
    %c0_i32_0 = arith.constant 0 : i32
    %c0_i32_1 = arith.constant 0 : i32
    return %2, %c0_i32_0 : i32, i32
  }
  func.func @transform_1(%arg0: i32, %arg1: i32) -> (i32, i32) {
    %c1_i32 = arith.constant 1 : i32
    %0 = arith.muli %arg0, %c1_i32 : i32
    %1 = arith.addi %0, %arg1 : i32
    %c0_i32 = arith.constant 0 : i32
    %2 = arith.minsi %1, %c0_i32 : i32
    %c0_i32_0 = arith.constant 0 : i32
    %c0_i32_1 = arith.constant 0 : i32
    return %2, %c0_i32_0 : i32, i32
  }
  func.func @transform_2(%arg0: i32, %arg1: i32) -> (i32, i32) {
    %c1_i32 = arith.constant 1 : i32
    %0 = arith.muli %arg0, %c1_i32 : i32
    %1 = arith.addi %0, %arg1 : i32
    %c0_i32 = arith.constant 0 : i32
    %2 = arith.minsi %1, %c0_i32 : i32
    %c0_i32_0 = arith.constant 0 : i32
    %c0_i32_1 = arith.constant 0 : i32
    return %2, %c0_i32_0 : i32, i32
  }
  func.func @transform_3(%arg0: i32, %arg1: i32) -> (i32, i32) {
    %c0_i32 = arith.constant 0 : i32
    %c0_i32_0 = arith.constant 0 : i32
    return %arg0, %c0_i32 : i32, i32
  }
}

</mosaic_0001>

<llo_original>
// kernel: tpu_custom_call.1
$region0: #{tpu_custom_call.1}
  #allocation0 [shape = 'u32[]', space=smem, size = 0x4, offset = 0x4, fixed_abs, tag = 'smem constant byte address 0x4 - core index']
  #allocation1 [shape = 'u32[144,128]{1,0:T(1,128)}', space=vmem, size = 0x12000, scoped, tag = 'internal scratch']
  #allocation2 [shape = 'f32[8,1]{1,0:T(8,128)}', space=vmem, size = 0x1000, scoped, tag = 'scratch operand']
  %s0 = inlined_call_operand.vmem [shape: f32[8,32], index: 0, kind: input, shape index: {}]
  %s1 = inlined_call_operand.hbm [shape: f32[8,32], index: 1, kind: input, shape index: {}]
  %s2 = inlined_call_operand.vmem [shape: f32[8,1], index: 2, kind: input, shape index: {}]
  %s3 = inlined_call_operand.hbm [shape: f32[8,128], index: 3, kind: output, shape index: {}]
  %s4 = sld [smem:[#allocation0]]
  $region34: #{tpu_custom_call.1} parent=0
    _
  %s6 = ssub.s32 1, %s4
  %s7 = scalar_select 0, %s6, %s4
  $region1: #{tpu_custom_call.1} parent=0
    #allocation3 [shape = 'u8[4096]{0}', space=vmem, size = 0x1000, scoped, tag = 'input window, operand 1, single buffered']
    #allocation4 [shape = 's32[1]{0}', space=sflag, size = 0x4, scoped, tag = 'scoped memory for tpu_custom_call.1']
    #allocation5 [shape = 's32[1]{0}', space=sflag, size = 0x4, scoped, tag = 'scoped memory for tpu_custom_call.1']
    #allocation6 [shape = 'u8[4096]{0}', space=vmem, size = 0x1000, scoped, tag = 'output window, operand 0, single buffered']
    %8 = vsyncpa [#allocation4], 0
    %9 = vsyncpa [#allocation5], 0
    // Predicated region
    $region2: #{tpu_custom_call.1} parent=1 // pred_check
      _
    $region3: #{tpu_custom_call.1} parent=1 // pred_check_branch
      %11 = sbr.rel (0) target = $region5
    $region4: #{tpu_custom_call.1} parent=1 // pred_region
      %s12 = sadd.s32 0, 0
      %p13 = scmp.lt.s32.totalorder %s12, 0
      %s14 = scalar_select %p13, %s12, 0
      %p15 = scmp.lt.s32.totalorder %s14, 0
      %s16 = scalar_select %p15, %s14, 0
      %s17 = smul.addr %s16, 8
      %s18 = scalar_lea.vmem %s0, %s17
      %s19 = sadd.s32 0, 0
      %p20 = scmp.lt.s32.totalorder %s19, 0
      %s21 = scalar_select %p20, %s19, 0
    $region5: #{tpu_custom_call.1} parent=1 // pred_fallthru
      _
    // Predicated region
    $region6: #{tpu_custom_call.1} parent=1 // pred_check
      _
    $region7: #{tpu_custom_call.1} parent=1 // pred_check_branch
      %23 = sbr.rel (0) target = $region9
    $region8: #{tpu_custom_call.1} parent=1 // pred_region
      %s24 = sadd.s32 0, 0
      %p25 = scmp.lt.s32.totalorder %s24, 0
      %s26 = scalar_select %p25, %s24, 0
      %s28 = ssub.s32 128, 128
      %29 = vsyncadd [#allocation4], %s28
      %s30 = smul.addr %s26, 128
      %s31 = scalar_lea.hbm %s1, %s30
      %s33 = sshll.u32 [#allocation3], 4
      %s34 = int_to_ptr.vmem [resolvable:$true] %s33
      %36 = dma.hbm_to_vmem [thread:$0]  %s31, 128, %s34, [#allocation4]
    $region9: #{tpu_custom_call.1} parent=1 // pred_fallthru
      _
    // Predicated region
    $region10: #{tpu_custom_call.1} parent=1 // pred_check
      _
    $region11: #{tpu_custom_call.1} parent=1 // pred_check_branch
      %38 = sbr.rel (0) target = $region13
    $region12: #{tpu_custom_call.1} parent=1 // pred_region
      %s39 = sadd.s32 0, 0
      %p40 = scmp.lt.s32.totalorder %s39, 0
      %s41 = scalar_select %p40, %s39, 0
      %p42 = scmp.lt.s32.totalorder %s41, 0
      %s43 = scalar_select %p42, %s41, 0
      %s44 = smul.addr %s43, 8
      %s45 = scalar_lea.vmem %s2, %s44
      %s46 = sadd.s32 0, 0
      %p47 = scmp.lt.s32.totalorder %s46, 0
      %s48 = scalar_select %p47, %s46, 0
    $region13: #{tpu_custom_call.1} parent=1 // pred_fallthru
      _
    // Predicated region
    $region14: #{tpu_custom_call.1} parent=1 // pred_check
      _
    $region15: #{tpu_custom_call.1} parent=1 // pred_check_branch
      %50 = sbr.rel (0) target = $region17
    $region16: #{tpu_custom_call.1} parent=1 // pred_region
      %51 = dma.done [#allocation4], 128
    $region17: #{tpu_custom_call.1} parent=1 // pred_fallthru
      _
    %s52 = sadd.s32 0, 0
    %p53 = scmp.lt.s32.totalorder %s52, 0
    %s54 = scalar_select %p53, %s52, 0
    %p55 = scmp.lt.s32.totalorder %s54, 0
    %s56 = scalar_select %p55, %s54, 0
    %s57 = smul.addr %s56, 8
    %s58 = scalar_lea.vmem %s0, %s57
    %s59 = sadd.s32 0, 0
    %p60 = scmp.lt.s32.totalorder %s59, 0
    %s61 = scalar_select %p60, %s59, 0
    %p62 = scmp.lt.s32.totalorder %s61, 0
    %s63 = scalar_select %p62, %s61, 0
    %s64 = smul.addr %s63, 8
    %s65 = scalar_lea.vmem %s2, %s64
    %s66 = sadd.s32 0, 0
    %p67 = scmp.lt.s32.totalorder %s66, 0
    %s68 = scalar_select %p67, %s66, 0
    %p69 = scmp.lt.s32.totalorder %s68, 0
    %s70 = scalar_select %p69, %s68, 0
    %s71 = smul.addr %s70, 8
    %s72 = scalar_lea.vmem %s0, %s71
    %s73 = sadd.s32 0, 0
    %p74 = scmp.lt.s32.totalorder %s73, 0
    %s75 = scalar_select %p74, %s73, 0
    %s76 = sadd.s32 0, 0
    %p77 = scmp.lt.s32.totalorder %s76, 0
    %s78 = scalar_select %p77, %s76, 0
    %s79 = sadd.s32 0, 0
    %p80 = scmp.lt.s32.totalorder %s79, 0
    %s81 = scalar_select %p80, %s79, 0
    %p82 = scmp.lt.s32.totalorder %s81, 0
    %s83 = scalar_select %p82, %s81, 0
    %s84 = smul.addr %s83, 8
    %s85 = scalar_lea.vmem %s2, %s84
    %s86 = sadd.s32 0, 0
    %p87 = scmp.lt.s32.totalorder %s86, 0
    %s88 = scalar_select %p87, %s86, 0
    %p89 = scmp.eq.s32.totalorder 0, 0
    // Predicated region
    $region18: #{tpu_custom_call.1} parent=1 // pred_check
      %p90 = pneg %p89
    $region19: #{tpu_custom_call.1} parent=1 // pred_check_branch
      %92 = sbr.rel (%p90) target = $region21
    $region20: #{tpu_custom_call.1} parent=1 // pred_region
      %vm93 = vcmask 7168
      %94 = vst.msk [vmem:[#allocation2] sm:$0xff] %vm93, 0.0
    $region21: #{tpu_custom_call.1} parent=1 // pred_fallthru
      _
    %v95 = vld [vmem:[%s72] sm:$0xff]
    %v96 = vld [vmem:[#allocation3] sm:$0xff]
    %v97 = vld [vmem:[%s85] sm:$0xff]
    %v98 = vsub.f32 %v95, %v96
    %v99 = vadd.f32 %v98, 1e-06
    %v100 = vmul.f32 %v99, %v99
    %vm101 = vcmask 261120
    %v103 = vsel %vm101, %v100, 0
    %105 = vmatprep.subr.mxu0 0.0
    %106 = vmatpush1.msra.mxu0 1.0
    %107 = vmatprep.subr.mxu0 0.0
    %108 = vmatpush1.msra.mxu0 1.0
    %109 = vmatprep.subr.mxu0 0.0
    %110 = vmatpush1.msra.mxu0 1.0
    %111 = vmatprep.subr.mxu0 0.0
    %112 = vmatpush1.msra.mxu0 1.0
    %113 = vmatprep.subr.mxu0 0.0
    %114 = vmatpush1.msra.mxu0 0.0
    %115 = vmatprep.subr.mxu0 0.0
    %116 = vmatpush1.msra.mxu0 0.0
    %117 = vmatprep.subr.mxu0 0.0
    %118 = vmatpush1.msra.mxu0 0.0
    %119 = vmatprep.subr.mxu0 0.0
    %120 = vmatpush1.msra.mxu0 0.0
    %121 = vmatprep.subr.mxu0 0.0
    %122 = vmatpush1.msra.mxu0 0.0
    %123 = vmatprep.subr.mxu0 0.0
    %124 = vmatpush1.msra.mxu0 0.0
    %125 = vmatprep.subr.mxu0 0.0
    %126 = vmatpush1.msra.mxu0 0.0
    %127 = vmatprep.subr.mxu0 0.0
    %128 = vmatpush1.msra.mxu0 0.0
    %129 = vmatprep.subr.mxu0 0.0
    %130 = vmatpush1.msra.mxu0 0.0
    %131 = vmatprep.subr.mxu0 0.0
    %132 = vmatpush1.msra.mxu0 0.0
    %133 = vmatprep.subr.mxu0 0.0
    %134 = vmatpush1.msra.mxu0 0.0
    %135 = vmatprep.subr.mxu0 0.0
    %136 = vmatpush1.msra.mxu0 0.0
    %137 = vmatprep.subr.mxu0 0.0
    %138 = vmatpush1.msra.mxu0 0.0
    %139 = vmatprep.subr.mxu0 0.0
    %140 = vmatpush1.msra.mxu0 0.0
    %141 = vmatprep.subr.mxu0 0.0
    %142 = vmatpush1.msra.mxu0 0.0
    %143 = vmatprep.subr.mxu0 0.0
    %144 = vmatpush1.msra.mxu0 0.0
    %145 = vmatprep.subr.mxu0 0.0
    %146 = vmatpush1.msra.mxu0 0.0
    %147 = vmatprep.subr.mxu0 0.0
    %148 = vmatpush1.msra.mxu0 0.0
    %149 = vmatprep.subr.mxu0 0.0
    %150 = vmatpush1.msra.mxu0 0.0
    %151 = vmatprep.subr.mxu0 0.0
    %152 = vmatpush1.msra.mxu0 0.0
    %153 = vmatprep.subr.mxu0 0.0
    %154 = vmatpush1.msra.mxu0 0.0
    %155 = vmatprep.subr.mxu0 0.0
    %156 = vmatpush1.msra.mxu0 0.0
    %157 = vmatprep.subr.mxu0 0.0
    %158 = vmatpush1.msra.mxu0 0.0
    %159 = vmatprep.subr.mxu0 0.0
    %160 = vmatpush1.msra.mxu0 0.0
    %161 = vmatprep.subr.mxu0 0.0
    %162 = vmatpush1.msra.mxu0 0.0
    %163 = vmatprep.subr.mxu0 0.0
    %164 = vmatpush1.msra.mxu0 0.0
    %165 = vmatprep.subr.mxu0 0.0
    %166 = vmatpush1.msra.mxu0 0.0
    %167 = vmatprep.subr.mxu0 0.0
    %168 = vmatpush1.msra.mxu0 0.0
    %169 = vmatprep.mubr.f32.mxu0 0.0
    %v170 = vand.u32 %v103, 4294901760
    %v171 = vsub.f32 %v103, %v170
    %v172 = vand.u32 %v171, 4294901760
    %v173 = vsub.f32 %v171, %v172
    %v174 = vand.u32 %v173, 4294901760
    %175 = vmatmul.mubr.f32.gmra.mrb[0].mxu0 %v174
    %v176 = vpop.f32.mrb[0].mxu0
    %v177 = vadd.f32 0.0, %v176
    %v178 = vpop.f32.mrb[0].mxu0
    %179 = vdwg.mxu0
    %180 = vmatprep.subr.mxu0 0.0
    %181 = vmatpush1.msra.mxu0 0.0
    %182 = vmatprep.subr.mxu0 0.0
    %183 = vmatpush1.msra.mxu0 0.0
    %184 = vmatprep.subr.mxu0 0.0
    %185 = vmatpush1.msra.mxu0 0.0
    %186 = vmatprep.subr.mxu0 0.0
    %187 = vmatpush1.msra.mxu0 0.0
    %188 = vmatprep.subr.mxu0 0.0
    %189 = vmatpush1.msra.mxu0 0.0
    %190 = vmatprep.subr.mxu0 0.0
    %191 = vmatpush1.msra.mxu0 0.0
    %192 = vmatprep.subr.mxu0 0.0
    %193 = vmatpush1.msra.mxu0 0.0
    %194 = vmatprep.subr.mxu0 0.0
    %195 = vmatpush1.msra.mxu0 0.0
    %196 = vmatprep.subr.mxu0 0.0
    %197 = vmatpush1.msra.mxu0 0.0
    %198 = vmatprep.subr.mxu0 0.0
    %199 = vmatpush1.msra.mxu0 0.0
    %200 = vmatprep.subr.mxu0 0.0
    %201 = vmatpush1.msra.mxu0 0.0
    %202 = vmatprep.subr.mxu0 0.0
    %203 = vmatpush1.msra.mxu0 0.0
    %204 = vmatprep.subr.mxu0 0.0
    %205 = vmatpush1.msra.mxu0 0.0
    %206 = vmatprep.subr.mxu0 0.0
    %207 = vmatpush1.msra.mxu0 0.0
    %208 = vmatprep.subr.mxu0 0.0
    %209 = vmatpush1.msra.mxu0 0.0
    %210 = vmatprep.subr.mxu0 0.0
    %211 = vmatpush1.msra.mxu0 0.0
    %212 = vmatprep.subr.mxu0 0.0
    %213 = vmatpush1.msra.mxu0 0.0
    %214 = vmatprep.subr.mxu0 0.0
    %215 = vmatpush1.msra.mxu0 0.0
    %216 = vmatprep.subr.mxu0 0.0
    %217 = vmatpush1.msra.mxu0 0.0
    %218 = vmatprep.subr.mxu0 0.0
    %219 = vmatpush1.msra.mxu0 0.0
    %220 = vmatprep.subr.mxu0 0.0
    %221 = vmatpush1.msra.mxu0 0.0
    %222 = vmatprep.subr.mxu0 0.0
    %223 = vmatpush1.msra.mxu0 0.0
    %224 = vmatprep.subr.mxu0 0.0
    %225 = vmatpush1.msra.mxu0 0.0
    %226 = vmatprep.subr.mxu0 0.0
    %227 = vmatpush1.msra.mxu0 0.0
    %228 = vmatprep.subr.mxu0 0.0
    %229 = vmatpush1.msra.mxu0 0.0
    %230 = vmatprep.subr.mxu0 0.0
    %231 = vmatpush1.msra.mxu0 0.0
    %232 = vmatprep.subr.mxu0 0.0
    %233 = vmatpush1.msra.mxu0 0.0
    %234 = vmatprep.subr.mxu0 0.0
    %235 = vmatpush1.msra.mxu0 0.0
    %236 = vmatprep.subr.mxu0 0.0
    %237 = vmatpush1.msra.mxu0 0.0
    %238 = vmatprep.subr.mxu0 0.0
    %239 = vmatpush1.msra.mxu0 0.0
    %240 = vmatprep.subr.mxu0 0.0
    %241 = vmatpush1.msra.mxu0 0.0
    %242 = vmatprep.subr.mxu0 0.0
    %243 = vmatpush1.msra.mxu0 0.0
    %244 = vmatprep.mubr.f32.mxu0 0.0
    %v245 = vand.u32 %v103, 4294901760
    %246 = vmatmul.mubr.f32.gmra.mrb[0].mxu0 %v245
    %v247 = vpop.f32.mrb[0].mxu0
    %v248 = vadd.f32 %v177, %v247
    %v249 = vpop.f32.mrb[0].mxu0
    %250 = vdwg.mxu0
    %251 = vmatprep.subr.mxu0 0.0
    %252 = vmatpush1.msra.mxu0 0.0
    %253 = vmatprep.subr.mxu0 0.0
    %254 = vmatpush1.msra.mxu0 0.0
    %255 = vmatprep.subr.mxu0 0.0
    %256 = vmatpush1.msra.mxu0 0.0
    %257 = vmatprep.subr.mxu0 0.0
    %258 = vmatpush1.msra.mxu0 0.0
    %259 = vmatprep.subr.mxu0 0.0
    %260 = vmatpush1.msra.mxu0 0.0
    %261 = vmatprep.subr.mxu0 0.0
    %262 = vmatpush1.msra.mxu0 0.0
    %263 = vmatprep.subr.mxu0 0.0
    %264 = vmatpush1.msra.mxu0 0.0
    %265 = vmatprep.subr.mxu0 0.0
    %266 = vmatpush1.msra.mxu0 0.0
    %267 = vmatprep.subr.mxu0 0.0
    %268 = vmatpush1.msra.mxu0 0.0
    %269 = vmatprep.subr.mxu0 0.0
    %270 = vmatpush1.msra.mxu0 0.0
    %271 = vmatprep.subr.mxu0 0.0
    %272 = vmatpush1.msra.mxu0 0.0
    %273 = vmatprep.subr.mxu0 0.0
    %274 = vmatpush1.msra.mxu0 0.0
    %275 = vmatprep.subr.mxu0 0.0
    %276 = vmatpush1.msra.mxu0 0.0
    %277 = vmatprep.subr.mxu0 0.0
    %278 = vmatpush1.msra.mxu0 0.0
    %279 = vmatprep.subr.mxu0 0.0
    %280 = vmatpush1.msra.mxu0 0.0
    %281 = vmatprep.subr.mxu0 0.0
    %282 = vmatpush1.msra.mxu0 0.0
    %283 = vmatprep.subr.mxu0 0.0
    %284 = vmatpush1.msra.mxu0 0.0
    %285 = vmatprep.subr.mxu0 0.0
    %286 = vmatpush1.msra.mxu0 0.0
    %287 = vmatprep.subr.mxu0 0.0
    %288 = vmatpush1.msra.mxu0 0.0
    %289 = vmatprep.subr.mxu0 0.0
    %290 = vmatpush1.msra.mxu0 0.0
    %291 = vmatprep.subr.mxu0 0.0
    %292 = vmatpush1.msra.mxu0 0.0
    %293 = vmatprep.subr.mxu0 0.0
    %294 = vmatpush1.msra.mxu0 0.0
    %295 = vmatprep.subr.mxu0 0.0
    %296 = vmatpush1.msra.mxu0 0.0
    %297 = vmatprep.subr.mxu0 0.0
    %298 = vmatpush1.msra.mxu0 0.0
    %299 = vmatprep.subr.mxu0 0.0
    %300 = vmatpush1.msra.mxu0 0.0
    %301 = vmatprep.subr.mxu0 0.0
    %302 = vmatpush1.msra.mxu0 0.0
    %303 = vmatprep.subr.mxu0 0.0
    %304 = vmatpush1.msra.mxu0 0.0
    %305 = vmatprep.subr.mxu0 0.0
    %306 = vmatpush1.msra.mxu0 0.0
    %307 = vmatprep.subr.mxu0 0.0
    %308 = vmatpush1.msra.mxu0 0.0
    %309 = vmatprep.subr.mxu0 0.0
    %310 = vmatpush1.msra.mxu0 0.0
    %311 = vmatprep.subr.mxu0 0.0
    %312 = vmatpush1.msra.mxu0 0.0
    %313 = vmatprep.subr.mxu0 0.0
    %314 = vmatpush1.msra.mxu0 0.0
    %315 = vmatprep.mubr.f32.mxu0 0.0
    %v316 = vand.u32 %v103, 4294901760
    %v317 = vsub.f32 %v103, %v316
    %318 = vmatmul.mubr.f32.gmra.mrb[0].mxu0 %v317
    %v319 = vpop.f32.mrb[0].mxu0
    %v320 = vadd.f32 %v248, %v319
    %v321 = vpop.f32.mrb[0].mxu0
    %322 = vdwg.mxu0
    %323 = vmatprep.subr.mxu0 0.0
    %324 = vmatpush1.msra.mxu0 1.0
    %325 = vmatprep.subr.mxu0 0.0
    %326 = vmatpush1.msra.mxu0 1.0
    %327 = vmatprep.subr.mxu0 0.0
    %328 = vmatpush1.msra.mxu0 1.0
    %329 = vmatprep.subr.mxu0 0.0
    %330 = vmatpush1.msra.mxu0 1.0
    %331 = vmatprep.subr.mxu0 0.0
    %332 = vmatpush1.msra.mxu0 0.0
    %333 = vmatprep.subr.mxu0 0.0
    %334 = vmatpush1.msra.mxu0 0.0
    %335 = vmatprep.subr.mxu0 0.0
    %336 = vmatpush1.msra.mxu0 0.0
    %337 = vmatprep.subr.mxu0 0.0
    %338 = vmatpush1.msra.mxu0 0.0
    %339 = vmatprep.subr.mxu0 0.0
    %340 = vmatpush1.msra.mxu0 0.0
    %341 = vmatprep.subr.mxu0 0.0
    %342 = vmatpush1.msra.mxu0 0.0
    %343 = vmatprep.subr.mxu0 0.0
    %344 = vmatpush1.msra.mxu0 0.0
    %345 = vmatprep.subr.mxu0 0.0
    %346 = vmatpush1.msra.mxu0 0.0
    %347 = vmatprep.subr.mxu0 0.0
    %348 = vmatpush1.msra.mxu0 0.0
    %349 = vmatprep.subr.mxu0 0.0
    %350 = vmatpush1.msra.mxu0 0.0
    %351 = vmatprep.subr.mxu0 0.0
    %352 = vmatpush1.msra.mxu0 0.0
    %353 = vmatprep.subr.mxu0 0.0
    %354 = vmatpush1.msra.mxu0 0.0
    %355 = vmatprep.subr.mxu0 0.0
    %356 = vmatpush1.msra.mxu0 0.0
    %357 = vmatprep.subr.mxu0 0.0
    %358 = vmatpush1.msra.mxu0 0.0
    %359 = vmatprep.subr.mxu0 0.0
    %360 = vmatpush1.msra.mxu0 0.0
    %361 = vmatprep.subr.mxu0 0.0
    %362 = vmatpush1.msra.mxu0 0.0
    %363 = vmatprep.subr.mxu0 0.0
    %364 = vmatpush1.msra.mxu0 0.0
    %365 = vmatprep.subr.mxu0 0.0
    %366 = vmatpush1.msra.mxu0 0.0
    %367 = vmatprep.subr.mxu0 0.0
    %368 = vmatpush1.msra.mxu0 0.0
    %369 = vmatprep.subr.mxu0 0.0
    %370 = vmatpush1.msra.mxu0 0.0
    %371 = vmatprep.subr.mxu0 0.0
    %372 = vmatpush1.msra.mxu0 0.0
    %373 = vmatprep.subr.mxu0 0.0
    %374 = vmatpush1.msra.mxu0 0.0
    %375 = vmatprep.subr.mxu0 0.0
    %376 = vmatpush1.msra.mxu0 0.0
    %377 = vmatprep.subr.mxu0 0.0
    %378 = vmatpush1.msra.mxu0 0.0
    %379 = vmatprep.subr.mxu0 0.0
    %380 = vmatpush1.msra.mxu0 0.0
    %381 = vmatprep.subr.mxu0 0.0
    %382 = vmatpush1.msra.mxu0 0.0
    %383 = vmatprep.subr.mxu0 0.0
    %384 = vmatpush1.msra.mxu0 0.0
    %385 = vmatprep.subr.mxu0 0.0
    %386 = vmatpush1.msra.mxu0 0.0
    %387 = vmatprep.mubr.f32.mxu0 0.0
    %v388 = vand.u32 %v103, 4294901760
    %v389 = vsub.f32 %v103, %v388
    %v390 = vand.u32 %v389, 4294901760
    %391 = vmatmul.mubr.f32.gmra.mrb[0].mxu0 %v390
    %v392 = vpop.f32.mrb[0].mxu0
    %v393 = vadd.f32 %v320, %v392
    %v394 = vpop.f32.mrb[0].mxu0
    %395 = vdwg.mxu0
    %396 = vmatprep.subr.mxu0 0.0
    %397 = vmatpush1.msra.mxu0 0.0
    %398 = vmatprep.subr.mxu0 0.0
    %399 = vmatpush1.msra.mxu0 0.0
    %400 = vmatprep.subr.mxu0 0.0
    %401 = vmatpush1.msra.mxu0 0.0
    %402 = vmatprep.subr.mxu0 0.0
    %403 = vmatpush1.msra.mxu0 0.0
    %404 = vmatprep.subr.mxu0 0.0
    %405 = vmatpush1.msra.mxu0 0.0
    %406 = vmatprep.subr.mxu0 0.0
    %407 = vmatpush1.msra.mxu0 0.0
    %408 = vmatprep.subr.mxu0 0.0
    %409 = vmatpush1.msra.mxu0 0.0
    %410 = vmatprep.subr.mxu0 0.0
    %411 = vmatpush1.msra.mxu0 0.0
    %412 = vmatprep.subr.mxu0 0.0
    %413 = vmatpush1.msra.mxu0 0.0
    %414 = vmatprep.subr.mxu0 0.0
    %415 = vmatpush1.msra.mxu0 0.0
    %416 = vmatprep.subr.mxu0 0.0
    %417 = vmatpush1.msra.mxu0 0.0
    %418 = vmatprep.subr.mxu0 0.0
    %419 = vmatpush1.msra.mxu0 0.0
    %420 = vmatprep.subr.mxu0 0.0
    %421 = vmatpush1.msra.mxu0 0.0
    %422 = vmatprep.subr.mxu0 0.0
    %423 = vmatpush1.msra.mxu0 0.0
    %424 = vmatprep.subr.mxu0 0.0
    %425 = vmatpush1.msra.mxu0 0.0
    %426 = vmatprep.subr.mxu0 0.0
    %427 = vmatpush1.msra.mxu0 0.0
    %428 = vmatprep.subr.mxu0 0.0
    %429 = vmatpush1.msra.mxu0 0.0
    %430 = vmatprep.subr.mxu0 0.0
    %431 = vmatpush1.msra.mxu0 0.0
    %432 = vmatprep.subr.mxu0 0.0
    %433 = vmatpush1.msra.mxu0 0.0
    %434 = vmatprep.subr.mxu0 0.0
    %435 = vmatpush1.msra.mxu0 0.0
    %436 = vmatprep.subr.mxu0 0.0
    %437 = vmatpush1.msra.mxu0 0.0
    %438 = vmatprep.subr.mxu0 0.0
    %439 = vmatpush1.msra.mxu0 0.0
    %440 = vmatprep.subr.mxu0 0.0
    %441 = vmatpush1.msra.mxu0 0.0
    %442 = vmatprep.subr.mxu0 0.0
    %443 = vmatpush1.msra.mxu0 0.0
    %444 = vmatprep.subr.mxu0 0.0
    %445 = vmatpush1.msra.mxu0 0.0
    %446 = vmatprep.subr.mxu0 0.0
    %447 = vmatpush1.msra.mxu0 0.0
    %448 = vmatprep.subr.mxu0 0.0
    %449 = vmatpush1.msra.mxu0 0.0
    %450 = vmatprep.subr.mxu0 0.0
    %451 = vmatpush1.msra.mxu0 0.0
    %452 = vmatprep.subr.mxu0 0.0
    %453 = vmatpush1.msra.mxu0 0.0
    %454 = vmatprep.subr.mxu0 0.0
    %455 = vmatpush1.msra.mxu0 0.0
    %456 = vmatprep.subr.mxu0 0.0
    %457 = vmatpush1.msra.mxu0 0.0
    %458 = vmatprep.subr.mxu0 0.0
    %459 = vmatpush1.msra.mxu0 0.0
    %460 = vmatprep.mubr.f32.mxu0 0.0
    %v461 = vand.u32 %v103, 4294901760
    %462 = vmatmul.mubr.f32.gmra.mrb[0].mxu0 %v461
    %v463 = vpop.f32.mrb[0].mxu0
    %v464 = vadd.f32 %v393, %v463
    %v465 = vpop.f32.mrb[0].mxu0
    %466 = vdwg.mxu0
    %467 = vmatprep.subr.mxu0 0.0
    %468 = vmatpush1.msra.mxu0 1.0
    %469 = vmatprep.subr.mxu0 0.0
    %470 = vmatpush1.msra.mxu0 1.0
    %471 = vmatprep.subr.mxu0 0.0
    %472 = vmatpush1.msra.mxu0 1.0
    %473 = vmatprep.subr.mxu0 0.0
    %474 = vmatpush1.msra.mxu0 1.0
    %475 = vmatprep.subr.mxu0 0.0
    %476 = vmatpush1.msra.mxu0 0.0
    %477 = vmatprep.subr.mxu0 0.0
    %478 = vmatpush1.msra.mxu0 0.0
    %479 = vmatprep.subr.mxu0 0.0
    %480 = vmatpush1.msra.mxu0 0.0
    %481 = vmatprep.subr.mxu0 0.0
    %482 = vmatpush1.msra.mxu0 0.0
    %483 = vmatprep.subr.mxu0 0.0
    %484 = vmatpush1.msra.mxu0 0.0
    %485 = vmatprep.subr.mxu0 0.0
    %486 = vmatpush1.msra.mxu0 0.0
    %487 = vmatprep.subr.mxu0 0.0
    %488 = vmatpush1.msra.mxu0 0.0
    %489 = vmatprep.subr.mxu0 0.0
    %490 = vmatpush1.msra.mxu0 0.0
    %491 = vmatprep.subr.mxu0 0.0
    %492 = vmatpush1.msra.mxu0 0.0
    %493 = vmatprep.subr.mxu0 0.0
    %494 = vmatpush1.msra.mxu0 0.0
    %495 = vmatprep.subr.mxu0 0.0
    %496 = vmatpush1.msra.mxu0 0.0
    %497 = vmatprep.subr.mxu0 0.0
    %498 = vmatpush1.msra.mxu0 0.0
    %499 = vmatprep.subr.mxu0 0.0
    %500 = vmatpush1.msra.mxu0 0.0
    %501 = vmatprep.subr.mxu0 0.0
    %502 = vmatpush1.msra.mxu0 0.0
    %503 = vmatprep.subr.mxu0 0.0
    %504 = vmatpush1.msra.mxu0 0.0
    %505 = vmatprep.subr.mxu0 0.0
    %506 = vmatpush1.msra.mxu0 0.0
    %507 = vmatprep.subr.mxu0 0.0
    %508 = vmatpush1.msra.mxu0 0.0
    %509 = vmatprep.subr.mxu0 0.0
    %510 = vmatpush1.msra.mxu0 0.0
    %511 = vmatprep.subr.mxu0 0.0
    %512 = vmatpush1.msra.mxu0 0.0
    %513 = vmatprep.subr.mxu0 0.0
    %514 = vmatpush1.msra.mxu0 0.0
    %515 = vmatprep.subr.mxu0 0.0
    %516 = vmatpush1.msra.mxu0 0.0
    %517 = vmatprep.subr.mxu0 0.0
    %518 = vmatpush1.msra.mxu0 0.0
    %519 = vmatprep.subr.mxu0 0.0
    %520 = vmatpush1.msra.mxu0 0.0
    %521 = vmatprep.subr.mxu0 0.0
    %522 = vmatpush1.msra.mxu0 0.0
    %523 = vmatprep.subr.mxu0 0.0
    %524 = vmatpush1.msra.mxu0 0.0
    %525 = vmatprep.subr.mxu0 0.0
    %526 = vmatpush1.msra.mxu0 0.0
    %527 = vmatprep.subr.mxu0 0.0
    %528 = vmatpush1.msra.mxu0 0.0
    %529 = vmatprep.subr.mxu0 0.0
    %530 = vmatpush1.msra.mxu0 0.0
    %531 = vmatprep.mubr.f32.mxu0 0.0
    %v532 = vand.u32 %v103, 4294901760
    %533 = vmatmul.mubr.f32.gmra.mrb[0].mxu0 %v532
    %v534 = vpop.f32.mrb[0].mxu0
    %v535 = vadd.f32 %v464, %v534
    %v536 = vpop.f32.mrb[0].mxu0
    %537 = vdwg.mxu0
    %v538 = vrsqrt.pop %v535
    %v539 = vmul.f32 %v535, %v538
    %vm540 = vcmp.eq.f32.partialorder %v535, inf
    %v541 = vsel %vm540, %v535, %v539
    %vm542 = vcmp.eq.f32.partialorder %v535, 0.0
    %v543 = vand.u32 %v535, 2147483648
    %v544 = vsel %vm542, %v543, %v541
    %v545 = vsub.f32 1.0, %v544
    %v546 = vmax.f32 %v545, 0.0
    %v547 = vmul.f32 %v546, %v546
    %v548 = vsub.f32 %v547, %v535
    %v549 = vmul.f32 %v97, %v548
    %v550 = vadd.f32 %v535, %v549
    %v551 = vld [vmem:[#allocation2] sm:$0xff]
    %v552 = vadd.f32 %v551, %v550
    %vm553 = vcmask 7168
    %554 = vst.msk [vmem:[#allocation2] sm:$0xff] %vm553, %v552
    // Predicated region
    $region22: #{tpu_custom_call.1} parent=1 // pred_check
      %p555 = pneg %p89
    $region23: #{tpu_custom_call.1} parent=1 // pred_check_branch
      %557 = sbr.rel (%p555) target = $region25
    $region24: #{tpu_custom_call.1} parent=1 // pred_region
      %v558 = vld [vmem:[#allocation2] sm:$0xff]
      %v559 = vsel %vm553, %v558, 0.0
      %v560 = vrot.slane %v559, 4
      %v561 = vadd.f32 %v559, %v560
      %v562 = vrot.slane %v561, 2
      %v563 = vadd.f32 %v561, %v562
      %v564 = vrot.slane %v563, 1
      %v565 = vadd.f32 %v563, %v564
      %567 = vset.pattern.permute.xlu0 0
      %568 = vperm.xlu0 %567, %v565
      %v569 = vpop.permute.xlu0 %568
      %571 = vst [vmem:[#allocation6] sm:$0xff] %v569
    $region25: #{tpu_custom_call.1} parent=1 // pred_fallthru
      _
    // Predicated region
    $region26: #{tpu_custom_call.1} parent=1 // pred_check
      _
    $region27: #{tpu_custom_call.1} parent=1 // pred_check_branch
      %573 = sbr.rel (0) target = $region29
    $region28: #{tpu_custom_call.1} parent=1 // pred_region
      %s575 = ssub.s32 128, 128
      %576 = vsyncadd [#allocation5], %s575
      %s578 = sshll.u32 [#allocation6], 4
      %s579 = int_to_ptr.vmem [resolvable:$true] %s578
      %581 = dma.vmem_to_hbm [thread:$0]  %s579, 128, %s3, [#allocation5]
    $region29: #{tpu_custom_call.1} parent=1 // pred_fallthru
      _
    // Predicated region
    $region30: #{tpu_custom_call.1} parent=1 // pred_check
      _
    $region31: #{tpu_custom_call.1} parent=1 // pred_check_branch
      %583 = sbr.rel (0) target = $region33
    $region32: #{tpu_custom_call.1} parent=1 // pred_region
      %584 = dma.done [#allocation5], 128
    $region33: #{tpu_custom_call.1} parent=1 // pred_fallthru
      _
    %585 = vsyncpa [#allocation4], 1
    %586 = vsyncpa [#allocation5], 1

</llo_original>
